<compile_context>
chip_gen: v6e
topology: v6e:2x2x1
jax: 0.10.0
libtpu: 0.0.40
codegen_flags: <defaults>
</compile_context>

<pallas_src>
import functools

import jax
import jax.numpy as jnp
from jax.experimental import pallas as pl
from jax.experimental.pallas import tpu as pltpu


def _zoom_kernel(w_ref, x_ref, o_ref):
    """w_ref: (B, H, H) interpolation matrices; x_ref/o_ref: (B, H, C*W) lane-dense tiles."""
    w = w_ref[...]
    x = x_ref[...]
    if x.dtype != w.dtype:              # trace-time dtype reconciliation (e.g. int inputs)
        x = x.astype(w.dtype)
    # out[b, h, w] = sum_k wmat[b, h, k] * x[b, k, w]  -> batched MXU matmul, f32 accumulate
    out = jnp.einsum("bhk,bkw->bhw", w, x, preferred_element_type=jnp.float32)
    o_ref[...] = out.astype(o_ref.dtype)


def _build_wmats(scale, H, mode, padding_mode, dtype):
    """(N, H, H) interpolation matrices matching affine_grid+grid_sample along H."""
    span = jnp.float32(H - 1)
    h = jnp.arange(H, dtype=jnp.float32)                  # output row index   (H,)
    j = jnp.arange(H, dtype=jnp.float32)                  # input column index (H,)
    s = scale.astype(jnp.float32)[:, None]                # (N, 1)

    # affine_grid, align_corners=True: y_base = -1 + 2h/(H-1); gy = s*y_base + (1 - s)
    y_base = -1.0 + 2.0 * h / span                        # (H,)
    gy = s * y_base[None, :] + (1.0 - s)                  # (N, H)
    # grid_sample unnormalization, align_corners=True: iy = (gy + 1)/2 * (H-1)
    iy = (gy + 1.0) * 0.5 * span                          # (N, H)

    if padding_mode == "reflection":
        # reflect about [0, H-1] (PyTorch reflect_coordinates, twice_high = 2*(H-1)), then clip
        a = jnp.abs(iy)
        extra = jnp.mod(a, span)
        flips = jnp.floor(a / span)
        iy = jnp.where(jnp.mod(flips, 2.0) == 0.0, extra, span - extra)
        iy = jnp.clip(iy, 0.0, span)
    elif padding_mode == "border":
        iy = jnp.clip(iy, 0.0, span)
    elif padding_mode == "zeros":
        pass  # out-of-range taps match no one-hot column below -> weight 0
    else:
        raise ValueError(padding_mode)

    if mode == "bilinear":
        i0 = jnp.floor(iy)
        frac = iy - i0
        i1 = i0 + 1.0
        # row h of wmat[n]: (1-frac) at column i0, frac at column i1.
        # exact float equality is safe while H < 2^24 (asserted by caller).
        wmat = ((1.0 - frac)[:, :, None] * (j[None, None, :] == i0[:, :, None]).astype(jnp.float32)
                + frac[:, :, None] * (j[None, None, :] == i1[:, :, None]).astype(jnp.float32))
    elif mode == "nearest":
        inear = jnp.round(iy)            # round-half-to-even; matches std::nearbyint default FE mode
        wmat = (j[None, None, :] == inear[:, :, None]).astype(jnp.float32)
    else:
        raise ValueError(mode)

    return wmat.astype(dtype)


def zoom(x, scale, mode="bilinear", padding_mode="reflection", block_samples=None):
    """Pallas implementation of deepdow Zoom.forward.

    x:     (n_samples, n_channels, lookback, n_assets)
    scale: (n_samples,)
    """
    N, C, H, W = x.shape
    assert H >= 2, "lookback must be >= 2"
    assert H < (1 << 24), "one-hot construction relies on exact f32 integer equality"
    CW = C * W
    dtype = x.dtype
    itemsize = jnp.dtype(dtype).itemsize

    # Lane-dense layout: (N, C, H, W) -> (N, H, C*W) so the lane axis is C*W wide.
    x2d = jnp.transpose(x, (0, 2, 1, 3)).reshape(N, H, CW)

    # bf16 stays bf16 (MXU-native with f32 accumulate); everything else computes in f32.
    wm_dtype = jnp.bfloat16 if dtype == jnp.bfloat16 else jnp.float32
    wmats = _build_wmats(scale, H, mode, padding_mode, wm_dtype)

    # Choose samples-per-grid-step: ~2 MiB of activation per step (in + out,
    # double-buffered ~= 4x this plus wmat) -- comfortably inside v7x's 64 MiB VMEM
    # and near HBM roofline on v5e/v6e; keep >= 2 grid steps for v7x's two TCs.
    if block_samples is None:
        per_sample = H * CW * itemsize
        B = max(1, min(N, (2 << 20) // max(per_sample, 1)))
        if N >= 2:
            B = min(B, max(1, N // 2))
    else:
        B = max(1, min(int(block_samples), N))

    # Pad sample count to a multiple of B (padded rows are zeros, sliced off afterwards).
    n_blocks = pl.cdiv(N, B)
    Np = n_blocks * B
    if Np != N:
        x2d = jnp.pad(x2d, ((0, Np - N), (0, 0), (0, 0)))
        wmats = jnp.pad(wmats, ((0, Np - N), (0, 0), (0, 0)))

    out2d = pl.pallas_call(
        _zoom_kernel,
        out_shape=jax.ShapeDtypeStruct((Np, H, CW), dtype),
        grid_spec=pltpu.PrefetchScalarGridSpec(
            num_scalar_prefetch=0,
            grid=(n_blocks,),
            in_specs=[
                pl.BlockSpec((B, H, H), lambda n: (n, 0, 0)),    # interpolation matrices
                pl.BlockSpec((B, H, CW), lambda n: (n, 0, 0)),   # lane-dense activations
            ],
            out_specs=pl.BlockSpec((B, H, CW), lambda n: (n, 0, 0)),
        ),
        compiler_params=pltpu.CompilerParams(dimension_semantics=("parallel",)),
    )(wmats, x2d)

    out2d = out2d[:N]
    # TODO(synk): for very large lookback (H >= ~1500) switch the dense (H,H) matmul
    # to a 2-tap gather to avoid O(H^2) wmat memory / MXU FLOPs.
    return out2d.reshape(N, H, C, W).transpose(0, 2, 1, 3)


def _zoom_ref(x, scale):
    """Pure-JAX reference (reflection + bilinear, gather-based) for a sanity check."""
    N, C, H, W = x.shape
    span = jnp.float32(H - 1)
    h = jnp.arange(H, dtype=jnp.float32)

    def one(xn, sn):
        y_base = -1.0 + 2.0 * h / span
        gy = sn * y_base + (1.0 - sn)
        iy = (gy + 1.0) * 0.5 * span
        a = jnp.abs(iy)
        extra = jnp.mod(a, span)
        flips = jnp.floor(a / span)
        iy = jnp.where(jnp.mod(flips, 2.0) == 0.0, extra, span - extra)
        iy = jnp.clip(iy, 0.0, span)
        i0 = jnp.floor(iy).astype(jnp.int32)
        frac = iy - i0.astype(jnp.float32)
        i1 = jnp.minimum(i0 + 1, H - 1)
        w1 = jnp.where(i0 + 1 <= H - 1, frac, 0.0)
        lo = xn[:, i0, :]
        hi = xn[:, i1, :]
        return (1.0 - frac)[None, :, None] * lo + w1[None, :, None] * hi

    return jax.vmap(one)(x, scale)


if __name__ == "__main__":
    key = jax.random.PRNGKey(0)
    N, C, H, W = 2, 4, 16, 16            # (n_samples, n_channels, lookback, n_assets)
    x = jax.random.normal(key, (N, C, H, W), dtype=jnp.float32)
    scale = jnp.array([0.5, 1.7], dtype=jnp.float32)   # zoom in / zoom out

    # f32 path: strict check against the gather-based reference
    out = zoom(x, scale, mode="bilinear", padding_mode="reflection")
    out = jax.block_until_ready(out)
    ref = _zoom_ref(x, scale)
    assert out.shape == x.shape and out.dtype == x.dtype
    assert jnp.allclose(out, ref, atol=1e-5, rtol=1e-5)

    # bf16 path: operands stay bf16 (f32 accumulate) -> loose tolerance check
    x_bf16 = x.astype(jnp.bfloat16)
    out_bf16 = jax.block_until_ready(zoom(x_bf16, scale))
    assert out_bf16.shape == x.shape and out_bf16.dtype == jnp.bfloat16
    assert jnp.allclose(out_bf16.astype(jnp.float32), ref, atol=5e-2, rtol=5e-2)

    print("KERNEL_OK")
</pallas_src>

<mosaic_0001>
module attributes {stable_mosaic.version = 11 : i64} {
  func.func @_zoom_kernel(%arg0: i32, %arg1: memref<1x16x16xf32, #tpu.memory_space<vmem>>, %arg2: memref<1x16x64xf32, #tpu.memory_space<vmem>>, %arg3: memref<1x16x64xf32, #tpu.memory_space<vmem>>) attributes {dimension_semantics = [#tpu.dimension_semantics<parallel>], iteration_bounds = array<i64: 2>, scalar_prefetch = 0 : i64, scratch_operands = 0 : i64, tpu.core_type = #tpu.core_type<tc>, window_params = [{transform_indices = @transform_0, window_bounds = array<i64: 1, 16, 16>}, {transform_indices = @transform_1, window_bounds = array<i64: 1, 16, 64>}, {transform_indices = @transform_2, window_bounds = array<i64: 1, 16, 64>}]} {
    %c0 = arith.constant 0 : index
    %c0_0 = arith.constant 0 : index
    %c0_1 = arith.constant 0 : index
    %0 = vector.load %arg1[%c0, %c0_0, %c0_1] : memref<1x16x16xf32, #tpu.memory_space<vmem>>, vector<1x16x16xf32>
    %c0_2 = arith.constant 0 : index
    %c0_3 = arith.constant 0 : index
    %c0_4 = arith.constant 0 : index
    %1 = vector.load %arg2[%c0_2, %c0_3, %c0_4] : memref<1x16x64xf32, #tpu.memory_space<vmem>>, vector<1x16x64xf32>
    "tpu.trace_start"() <{level = 10 : i32, message = "bhk,bkw->bhw"}> : () -> ()
    %cst = arith.constant dense<0.000000e+00> : vector<1x16x64xf32>
    %2 = tpu.matmul %0, %1, %cst {dimension_numbers = #tpu.dot_dimension_numbers<[2], [1], [1], [2], [0, 0, 0, 1, 1, 2], [0], [0]>} : vector<1x16x16xf32>, vector<1x16x64xf32>, vector<1x16x64xf32> -> vector<1x16x64xf32>
    "tpu.trace_stop"() : () -> ()
    %c0_5 = arith.constant 0 : index
    %c0_6 = arith.constant 0 : index
    %c0_7 = arith.constant 0 : index
    %3 = vector.load %arg3[%c0_5, %c0_6, %c0_7] : memref<1x16x64xf32, #tpu.memory_space<vmem>>, vector<1x16x64xf32>
    tpu.vector_store %arg3[%c0_5, %c0_6, %c0_7], %2 {strides = array<i32>} : memref<1x16x64xf32, #tpu.memory_space<vmem>>, vector<1x16x64xf32>,
    return
  }
  func.func @transform_0(%arg0: i32) -> (i32, i32, i32) {
    %c0_i32 = arith.constant 0 : i32
    %c0_i32_0 = arith.constant 0 : i32
    %c0_i32_1 = arith.constant 0 : i32
    return %arg0, %c0_i32, %c0_i32_0 : i32, i32, i32
  }
  func.func @transform_1(%arg0: i32) -> (i32, i32, i32) {
    %c0_i32 = arith.constant 0 : i32
    %c0_i32_0 = arith.constant 0 : i32
    %c0_i32_1 = arith.constant 0 : i32
    return %arg0, %c0_i32, %c0_i32_0 : i32, i32, i32
  }
  func.func @transform_2(%arg0: i32) -> (i32, i32, i32) {
    %c0_i32 = arith.constant 0 : i32
    %c0_i32_0 = arith.constant 0 : i32
    %c0_i32_1 = arith.constant 0 : i32
    return %arg0, %c0_i32, %c0_i32_0 : i32, i32, i32
  }
}

</mosaic_0001>

<llo_original>
// kernel: tpu_custom_call.1
$region0: #{tpu_custom_call.1}
  #allocation0 [shape = 'u32[]', space=smem, size = 0x4, offset = 0x4, fixed_abs, tag = 'smem constant byte address 0x4 - core index']
  #allocation1 [shape = 'u32[144,128]{1,0:T(1,128)}', space=vmem, size = 0x12000, scoped, tag = 'internal scratch']
  %s0 = inlined_call_operand.hbm [shape: f32[2,16,16], index: 0, kind: input, shape index: {}]
  %s1 = inlined_call_operand.hbm [shape: f32[2,16,64], index: 1, kind: input, shape index: {}]
  %s2 = inlined_call_operand.hbm [shape: f32[2,16,64], index: 2, kind: output, shape index: {}]
  %s3 = sld [smem:[#allocation0]]
  $region49: #{tpu_custom_call.1} parent=0
    _
  %s5 = ssub.s32 1, %s3
  %s6 = scalar_select 0, %s5, %s3
  $region1: #{tpu_custom_call.1} parent=0
    #allocation2 [shape = 'u8[16384]{0}', space=vmem, size = 0x4000, scoped, tag = 'input window, operand 0']
    #allocation3 [shape = 's32[2]{0}', space=sflag, size = 0x8, scoped, tag = 'scoped memory for tpu_custom_call.1']
    #allocation4 [shape = 's32[2]{0}', space=sflag, size = 0x8, scoped, tag = 'scoped memory for tpu_custom_call.1']
    #allocation5 [shape = 'u8[16384]{0}', space=vmem, size = 0x4000, scoped, tag = 'input window, operand 1']
    #allocation6 [shape = 's32[2]{0}', space=sflag, size = 0x8, scoped, tag = 'scoped memory for tpu_custom_call.1']
    #allocation7 [shape = 'u8[16384]{0}', space=vmem, size = 0x4000, scoped, tag = 'output window, operand 0']
    %7 = vsyncpa [#allocation3], 0
    %s8 = scalar_lea.sflag [#allocation3], 1
    %9 = vsyncpa %s8, 0
    %10 = vsyncpa [#allocation6], 0
    %s11 = scalar_lea.sflag [#allocation6], 1
    %12 = vsyncpa %s11, 0
    %13 = vsyncpa [#allocation4], 0
    %s14 = scalar_lea.sflag [#allocation4], 1
    %15 = vsyncpa %s14, 0
    loop: start=0, step=1, limit=4
    $region2: #{tpu_custom_call.1} parent=1 // loop_pre_header
      _
    $region3: #{tpu_custom_call.1} parent=1 // loop_header
      %s17 = sphi 0, %s21
      %p18 = scmp.ge.s32.totalorder %s17, 4
      %s27 = sphi 0, %s29
      %s30 = sphi 0, %s27
      %s31 = sphi 0, %s30
      %s47 = sphi 0, %s31
      %s53 = sphi 0, %s55
      %s56 = sphi 0, %s53
      %s57 = sphi 0, %s56
      %s73 = sphi 0, %s57
      %s79 = sphi 0, %s81
      %s82 = sphi 0, %s79
      %s83 = sphi 0, %s82
      %s99 = sphi 0, %s83
    $region4: #{tpu_custom_call.1} parent=1 // loop_header_branch
      %20 = sbr.rel (%p18) target = $region8
    $region5: #{tpu_custom_call.1} parent=1 // loop_body
      %s22 = ssub.s32 %s17, 1
      %s23 = ssub.s32 %s17, 2
      %s24 = sadd.s32 %s17, 1
      %s25 = ssub.s32 %s17, %s24
      %p26 = scmp.eq.s32.totalorder %s25, 0
      %s28 = sadd.s32 %s27, 1
      %s29 = scalar_select %p26, %s27, %s28
      %p32 = pneg %p26
      %p33 = scmp.eq.s32.totalorder %s17, 1
      %p34 = por %p32, %p33
      %p35 = scmp.ne.s32.totalorder %s27, %s30
      %p36 = scmp.eq.s32.totalorder %s17, 0
      %p37 = por %p35, %p36
      %p38 = scmp.ne.s32.totalorder %s27, %s30
      %p39 = scmp.eq.s32.totalorder %s22, 1
      %p40 = por %p38, %p39
      %p41 = scmp.ne.s32.totalorder %s30, %s31
      %p42 = scmp.eq.s32.totalorder %s22, 0
      %p43 = por %p41, %p42
      %p44 = scmp.ne.s32.totalorder %s30, %s31
      %p45 = scmp.eq.s32.totalorder %s23, 1
      %p46 = por %p44, %p45
      %p48 = scmp.ne.s32.totalorder %s31, %s47
      %p49 = scmp.eq.s32.totalorder %s23, 0
      %p50 = por %p48, %p49
      %s51 = ssub.s32 %s17, %s24
      %p52 = scmp.eq.s32.totalorder %s51, 0
      %s54 = sadd.s32 %s53, 1
      %s55 = scalar_select %p52, %s53, %s54
      %p58 = pneg %p52
      %p59 = scmp.eq.s32.totalorder %s17, 1
      %p60 = por %p58, %p59
      %p61 = scmp.ne.s32.totalorder %s53, %s56
      %p62 = scmp.eq.s32.totalorder %s17, 0
      %p63 = por %p61, %p62
      %p64 = scmp.ne.s32.totalorder %s53, %s56
      %p65 = scmp.eq.s32.totalorder %s22, 1
      %p66 = por %p64, %p65
      %p67 = scmp.ne.s32.totalorder %s56, %s57
      %p68 = scmp.eq.s32.totalorder %s22, 0
      %p69 = por %p67, %p68
      %p70 = scmp.ne.s32.totalorder %s56, %s57
      %p71 = scmp.eq.s32.totalorder %s23, 1
      %p72 = por %p70, %p71
      %p74 = scmp.ne.s32.totalorder %s57, %s73
      %p75 = scmp.eq.s32.totalorder %s23, 0
      %p76 = por %p74, %p75
      %s77 = ssub.s32 %s17, %s24
      %p78 = scmp.eq.s32.totalorder %s77, 0
      %s80 = sadd.s32 %s79, 1
      %s81 = scalar_select %p78, %s79, %s80
      %p84 = pneg %p78
      %p85 = scmp.eq.s32.totalorder %s17, 1
      %p86 = por %p84, %p85
      %p87 = scmp.ne.s32.totalorder %s79, %s82
      %p88 = scmp.eq.s32.totalorder %s17, 0
      %p89 = por %p87, %p88
      %p90 = scmp.ne.s32.totalorder %s79, %s82
      %p91 = scmp.eq.s32.totalorder %s22, 1
      %p92 = por %p90, %p91
      %p93 = scmp.ne.s32.totalorder %s82, %s83
      %p94 = scmp.eq.s32.totalorder %s22, 0
      %p95 = por %p93, %p94
      %p96 = scmp.ne.s32.totalorder %s82, %s83
      %p97 = scmp.eq.s32.totalorder %s23, 1
      %p98 = por %p96, %p97
      %p100 = scmp.ne.s32.totalorder %s83, %s99
      %p101 = scmp.eq.s32.totalorder %s23, 0
      %p102 = por %p100, %p101
      %p103 = scmp.le.s32.totalorder 1, %s17
      %p104 = scmp.lt.s32.totalorder %s17, 3
      %p105 = pnand %p103, %p104
      %p106 = pneg %p105
      // Predicated region
      $region9: #{tpu_custom_call.1} parent=5 // pred_check
        _
      $region10: #{tpu_custom_call.1} parent=5 // pred_check_branch
        %108 = sbr.rel (%p105) target = $region12
      $region11: #{tpu_custom_call.1} parent=5 // pred_region
        %s109 = ssub.s32 %s17, 1
      $region12: #{tpu_custom_call.1} parent=5 // pred_fallthru
        _
      %p110 = scmp.lt.s32.totalorder %s17, 2
      // Predicated region
      $region13: #{tpu_custom_call.1} parent=5 // pred_check
        %p111 = pneg %p110
      $region14: #{tpu_custom_call.1} parent=5 // pred_check_branch
        %113 = sbr.rel (%p111) target = $region16
      $region15: #{tpu_custom_call.1} parent=5 // pred_region
        // Predicated region
        $region17: #{tpu_custom_call.1} parent=15 // pred_check
          %p114 = pneg %p37
        $region18: #{tpu_custom_call.1} parent=15 // pred_check_branch
          %116 = sbr.rel (%p114) target = $region20
        $region19: #{tpu_custom_call.1} parent=15 // pred_region
          %s117 = sand.u32 %s27, 1
          %s118 = scalar_lea.sflag [#allocation3], %s117
          %s119 = sand.u32 %s27, 1
          %s120 = smul.addr %s119, 16
          %s121 = scalar_lea.vmem [#allocation2], %s120
          %s123 = ssub.s32 256, 256
          %124 = vsyncadd %s118, %s123
          %s125 = smul.addr %s17, 2
          %s126 = smul.addr %s125, 128
          %s127 = scalar_lea.hbm %s0, %s126
          %s128 = sshll.u32 %s121, 4
          %s129 = int_to_ptr.vmem [resolvable:$true] %s128
          %134 = dma.hbm_to_vmem [thread:$0]  %s127, 256, %s129, %s118, 128, 128, 8
        $region20: #{tpu_custom_call.1} parent=15 // pred_fallthru
          _
        // Predicated region
        $region21: #{tpu_custom_call.1} parent=15 // pred_check
          %p135 = pneg %p63
        $region22: #{tpu_custom_call.1} parent=15 // pred_check_branch
          %137 = sbr.rel (%p135) target = $region24
        $region23: #{tpu_custom_call.1} parent=15 // pred_region
          %s138 = sand.u32 %s53, 1
          %s139 = scalar_lea.sflag [#allocation6], %s138
          %s140 = sand.u32 %s53, 1
          %s141 = smul.addr %s140, 16
          %s142 = scalar_lea.vmem [#allocation5], %s141
          %s144 = ssub.s32 256, 256
          %145 = vsyncadd %s139, %s144
          %s146 = smul.addr %s17, 2
          %s147 = smul.addr %s146, 128
          %s148 = scalar_lea.hbm %s1, %s147
          %s149 = sshll.u32 %s142, 4
          %s150 = int_to_ptr.vmem [resolvable:$true] %s149
          %155 = dma.hbm_to_vmem [thread:$0]  %s148, 256, %s150, %s139, 128, 128, 8
        $region24: #{tpu_custom_call.1} parent=15 // pred_fallthru
          _
      $region16: #{tpu_custom_call.1} parent=5 // pred_fallthru
        _
      %p156 = scmp.le.s32.totalorder 1, %s17
      %p157 = scmp.lt.s32.totalorder %s17, 3
      %p158 = pnand %p156, %p157
      %p159 = pneg %p158
      // Predicated region
      $region25: #{tpu_custom_call.1} parent=5 // pred_check
        _
      $region26: #{tpu_custom_call.1} parent=5 // pred_check_branch
        %161 = sbr.rel (%p158) target = $region28
      $region27: #{tpu_custom_call.1} parent=5 // pred_region
        %s162 = ssub.s32 %s17, 1
        %s163 = sand.u32 %s30, 1
        %s164 = scalar_lea.sflag [#allocation3], %s163
        %s165 = sand.u32 %s30, 1
        %s166 = smul.addr %s165, 16
        %s167 = scalar_lea.vmem [#allocation2], %s166
        // Predicated region
        $region29: #{tpu_custom_call.1} parent=27 // pred_check
          %p168 = pneg %p43
        $region30: #{tpu_custom_call.1} parent=27 // pred_check_branch
          %170 = sbr.rel (%p168) target = $region32
        $region31: #{tpu_custom_call.1} parent=27 // pred_region
          %171 = dma.done %s164, 256
        $region32: #{tpu_custom_call.1} parent=27 // pred_fallthru
          _
        %s172 = sand.u32 %s56, 1
        %s173 = scalar_lea.sflag [#allocation6], %s172
        %s174 = sand.u32 %s56, 1
        %s175 = smul.addr %s174, 16
        %s176 = scalar_lea.vmem [#allocation5], %s175
        // Predicated region
        $region33: #{tpu_custom_call.1} parent=27 // pred_check
          %p177 = pneg %p69
        $region34: #{tpu_custom_call.1} parent=27 // pred_check_branch
          %179 = sbr.rel (%p177) target = $region36
        $region35: #{tpu_custom_call.1} parent=27 // pred_region
          %180 = dma.done %s173, 256
        $region36: #{tpu_custom_call.1} parent=27 // pred_fallthru
          _
        %s181 = sand.u32 %s30, 1
        %s182 = scalar_lea.sflag [#allocation3], %s181
        %s183 = sand.u32 %s30, 1
        %s184 = smul.addr %s183, 16
        %s185 = scalar_lea.vmem [#allocation2], %s184
        %p186 = pneg %p43
        %p187 = pneg %p40
        %s188 = sand.u32 %s56, 1
        %s189 = scalar_lea.sflag [#allocation6], %s188
        %s190 = sand.u32 %s56, 1
        %s191 = smul.addr %s190, 16
        %s192 = scalar_lea.vmem [#allocation5], %s191
        %p193 = pneg %p69
        %p194 = pneg %p66
        %p195 = pneg %p95
        %p196 = pneg %p92
        %s197 = sand.u32 %s82, 1
        %s198 = scalar_lea.sflag [#allocation4], %s197
        %s199 = sand.u32 %s82, 1
        %s200 = smul.addr %s199, 16
        %s201 = scalar_lea.vmem [#allocation7], %s200
        %v202 = vld [vmem:[%s167] sm:$0xff]
        %v203 = vld [vmem:[%s167 + $0x8] sm:$0xff]
        %v204 = vld [vmem:[%s176] sm:$0xff]
        %v205 = vld [vmem:[%s176 + $0x8] sm:$0xff]
        %vm206 = vcmask 130048
        %v208 = vsel %vm206, %v202, 0
        %v211 = vsel %vm206, %v203, 0
        %213 = vmatprep.subr.mxu0 0.0
        %214 = vmatpush1.msra.mxu0 0.0
        %215 = vmatprep.subr.mxu0 0.0
        %216 = vmatpush1.msra.mxu0 0.0
        %217 = vmatprep.subr.mxu0 0.0
        %218 = vmatpush1.msra.mxu0 0.0
        %219 = vmatprep.subr.mxu0 0.0
        %220 = vmatpush1.msra.mxu0 0.0
        %221 = vmatprep.subr.mxu0 0.0
        %222 = vmatpush1.msra.mxu0 0.0
        %223 = vmatprep.subr.mxu0 0.0
        %224 = vmatpush1.msra.mxu0 0.0
        %225 = vmatprep.subr.mxu0 0.0
        %226 = vmatpush1.msra.mxu0 0.0
        %227 = vmatprep.subr.mxu0 0.0
        %228 = vmatpush1.msra.mxu0 0.0
        %229 = vmatprep.subr.mxu0 0.0
        %230 = vmatpush1.msra.mxu0 0.0
        %231 = vmatprep.subr.mxu0 0.0
        %232 = vmatpush1.msra.mxu0 0.0
        %233 = vmatprep.subr.mxu0 0.0
        %234 = vmatpush1.msra.mxu0 0.0
        %235 = vmatprep.subr.mxu0 0.0
        %236 = vmatpush1.msra.mxu0 0.0
        %237 = vmatprep.subr.mxu0 0.0
        %238 = vmatpush1.msra.mxu0 0.0
        %239 = vmatprep.subr.mxu0 0.0
        %240 = vmatpush1.msra.mxu0 0.0
        %241 = vmatprep.subr.mxu0 0.0
        %242 = vmatpush1.msra.mxu0 %v205
        %243 = vmatprep.subr.mxu0 0.0
        %244 = vmatpush1.msra.mxu0 %v204
        %245 = vmatprep.subr.mxu0 0.0
        %246 = vmatpush2.msra.mxu0 0.0
        %247 = vmatprep.subr.mxu0 0.0
        %248 = vmatpush2.msra.mxu0 0.0
        %249 = vmatprep.subr.mxu0 0.0
        %250 = vmatpush2.msra.mxu0 0.0
        %251 = vmatprep.subr.mxu0 0.0
        %252 = vmatpush2.msra.mxu0 0.0
        %253 = vmatprep.subr.mxu0 0.0
        %254 = vmatpush2.msra.mxu0 0.0
        %255 = vmatprep.subr.mxu0 0.0
        %256 = vmatpush2.msra.mxu0 0.0
        %257 = vmatprep.subr.mxu0 0.0
        %258 = vmatpush2.msra.mxu0 0.0
        %259 = vmatprep.subr.mxu0 0.0
        %260 = vmatpush2.msra.mxu0 0.0
        %261 = vmatprep.subr.mxu0 0.0
        %262 = vmatpush2.msra.mxu0 0.0
        %263 = vmatprep.subr.mxu0 0.0
        %264 = vmatpush2.msra.mxu0 0.0
        %265 = vmatprep.subr.mxu0 0.0
        %266 = vmatpush2.msra.mxu0 0.0
        %267 = vmatprep.subr.mxu0 0.0
        %268 = vmatpush2.msra.mxu0 0.0
        %269 = vmatprep.subr.mxu0 0.0
        %270 = vmatpush2.msra.mxu0 0.0
        %271 = vmatprep.subr.mxu0 0.0
        %272 = vmatpush2.msra.mxu0 0.0
        %273 = vmatprep.subr.mxu0 0.0
        %274 = vmatpush2.msra.mxu0 0.0
        %275 = vmatprep.subr.mxu0 0.0
        %276 = vmatpush2.msra.mxu0 0.0
        %277 = vmatprep.mubr.f32.mxu0 0.0
        %278 = vmatmul.mubr.f32.gmra.mxu0 %v208
        %v279 = vpop.f32.mrf.mxu0
        %v280 = vadd.f32 0.0, %v279
        %v281 = vpop.f32.mrf.mxu0
        %282 = vmatprep.mubr.f32.mxu0 0.0
        %283 = vmatmul.mubr.f32.gmra.mxu0 %v211
        %v284 = vpop.f32.mrf.mxu0
        %v285 = vadd.f32 0.0, %v284
        %v286 = vpop.f32.mrf.mxu0
        %287 = vdwg.mxu0
        %vm288 = vcmask 523264
        %289 = vst.msk [vmem:[%s201] sm:$0xff] %vm288, %v280
        %290 = vst.msk [vmem:[%s201 + $0x8] sm:$0xff] %vm288, %v285
        %s291 = sand.u32 %s82, 1
        %s292 = scalar_lea.sflag [#allocation4], %s291
        %s293 = sand.u32 %s82, 1
        %s294 = smul.addr %s293, 16
        %s295 = scalar_lea.vmem [#allocation7], %s294
        // Predicated region
        $region37: #{tpu_custom_call.1} parent=27 // pred_check
          %p296 = pneg %p92
        $region38: #{tpu_custom_call.1} parent=27 // pred_check_branch
          %298 = sbr.rel (%p296) target = $region40
        $region39: #{tpu_custom_call.1} parent=27 // pred_region
          %s300 = ssub.s32 256, 256
          %301 = vsyncadd %s292, %s300
          %s302 = smul.addr %s22, 2
          %s303 = smul.addr %s302, 128
          %s304 = scalar_lea.hbm %s2, %s303
          %s305 = sshll.u32 %s295, 4
          %s306 = int_to_ptr.vmem [resolvable:$true] %s305
          %311 = dma.vmem_to_hbm [thread:$0]  %s306, 256, %s304, %s292, 128, 128, 8
        $region40: #{tpu_custom_call.1} parent=27 // pred_fallthru
          _
      $region28: #{tpu_custom_call.1} parent=5 // pred_fallthru
        _
      %p312 = scmp.le.s32.totalorder 2, %s17
      // Predicated region
      $region41: #{tpu_custom_call.1} parent=5 // pred_check
        %p313 = pneg %p312
      $region42: #{tpu_custom_call.1} parent=5 // pred_check_branch
        %315 = sbr.rel (%p313) target = $region44
      $region43: #{tpu_custom_call.1} parent=5 // pred_region
        %s316 = ssub.s32 %s17, 2
        // Predicated region
        $region45: #{tpu_custom_call.1} parent=43 // pred_check
          %p317 = pneg %p98
        $region46: #{tpu_custom_call.1} parent=43 // pred_check_branch
          %319 = sbr.rel (%p317) target = $region48
        $region47: #{tpu_custom_call.1} parent=43 // pred_region
          %s320 = sand.u32 %s83, 1
          %s321 = scalar_lea.sflag [#allocation4], %s320
          %s322 = sand.u32 %s83, 1
          %s323 = smul.addr %s322, 16
          %s324 = scalar_lea.vmem [#allocation7], %s323
          %325 = dma.done %s321, 256
        $region48: #{tpu_custom_call.1} parent=43 // pred_fallthru
          _
      $region44: #{tpu_custom_call.1} parent=5 // pred_fallthru
        _
    $region6: #{tpu_custom_call.1} parent=1 // loop_footer
      %s21 = sadd.s32 1, %s17
    $region7: #{tpu_custom_call.1} parent=1 // loop_footer_branch
      %16 = sbr.rel target = $region3
    $region8: #{tpu_custom_call.1} parent=1 // loop_exit
      _
    %326 = vsyncpa [#allocation3], 1
    %s327 = scalar_lea.sflag [#allocation3], 1
    %328 = vsyncpa %s327, 1
    %329 = vsyncpa [#allocation6], 1
    %s330 = scalar_lea.sflag [#allocation6], 1
    %331 = vsyncpa %s330, 1
    %332 = vsyncpa [#allocation4], 1
    %s333 = scalar_lea.sflag [#allocation4], 1
    %334 = vsyncpa %s333, 1

</llo_original>
